<compile_context>
chip_gen: v6e
topology: v6e:2x2x1
jax: 0.10.0
libtpu: 0.0.40
codegen_flags: <defaults>
</compile_context>

<pallas_src>
import functools

import numpy as np
import jax
import jax.numpy as jnp
from jax.experimental import pallas as pl
from jax.experimental.pallas import tpu as pltpu


def _round_up(n: int, m: int) -> int:
    return (n + m - 1) // m * m


def _dense_bottleneck_kernel(x_ref, w1_ref, w2s_ref, s1_ref, b1_ref,
                             s2_ref, b2_ref, mask_ref, o_ref, *,
                             kernel_size, pad, g_p, apply_mask):
    """One packed block: (C_in_p, Lt) activations -> (G_p, Lt) new features."""
    f32 = jnp.float32
    mxu_dtype = w1_ref.dtype

    # --- neck_conv: folded BN1 -> ReLU -> 1x1 conv (one MXU matmul) ---------
    x = x_ref[0].astype(f32)                                    # (C_in_p, Lt)
    h1 = jnp.maximum(x * s1_ref[...] + b1_ref[...], 0.0)        # f32 VPU FMA
    y1 = jnp.dot(w1_ref[...], h1.astype(mxu_dtype),
                 preferred_element_type=f32)                    # (C_mid_p, Lt)

    # --- main_conv: folded BN2 -> ReLU; zero the per-element padded tails ---
    h2 = jnp.maximum(y1 * s2_ref[...] + b2_ref[...], 0.0)
    if apply_mask:
        # Padded tail lanes hold ReLU(b2) garbage; zeroing them makes the
        # zero tails act as exact 'same'-padding for the K-tap conv below.
        h2 = h2 * mask_ref[...]
    h2 = h2.astype(mxu_dtype)

    # --- K-tap conv: ONE stacked matmul + K output-side lane rolls (XLU) ----
    y2 = jnp.dot(w2s_ref[...], h2, preferred_element_type=f32)  # (K*G_p, Lt)
    lt = y2.shape[-1]
    acc = None
    for k in range(kernel_size):              # static unroll, K is small
        blk = y2[k * g_p:(k + 1) * g_p, :]    # sublane-aligned static slice
        shift = (pad - k) % lt                # out[t] needs tap_k @ h2[t+k-pad]
        if shift:
            # Wrap-around lanes land on zero tails (L_pad - L >= pad enforced),
            # so no edge mask is needed after the roll.
            blk = pltpu.roll(blk, shift, 1)
        acc = blk if acc is None else acc + blk
    o_ref[0] = acc.astype(o_ref.dtype)


@functools.partial(jax.jit, static_argnames=("kernel_size", "use_bf16_mxu"))
def dense_bottleneck_forward(x, params, *, kernel_size, use_bf16_mxu=True):
    """Fused DenseBottleNeck forward (inference).

    x      : (B, C_in, L)
    params : BN stats (gamma/beta/mean/var 1 & 2) and conv weights
             w1 (C_mid, C_in, 1), w2 (growth, C_mid, K).
    returns: (B, C_in + growth, L)
    """
    B, C_in, L = x.shape
    K = kernel_size
    assert K % 2 == 1, "'same'-padding path assumes odd filter_length"
    pad = (K - 1) // 2
    w1 = params["w1"]
    w2 = params["w2"]
    C_mid = w1.shape[0]
    growth = w2.shape[0]
    assert w2.shape == (growth, C_mid, K)
    eps = 1e-5
    f32 = jnp.float32
    mxu_dtype = jnp.bfloat16 if use_bf16_mxu else f32

    # Fold inference-mode BatchNorm into per-channel scale/shift (f32).
    s1 = (params["gamma1"] * jax.lax.rsqrt(params["var1"] + eps)).astype(f32)
    b1 = (params["beta1"].astype(f32) - params["mean1"].astype(f32) * s1)
    s2 = (params["gamma2"] * jax.lax.rsqrt(params["var2"] + eps)).astype(f32)
    b2 = (params["beta2"].astype(f32) - params["mean2"].astype(f32) * s2)

    # Padded sizes: channels to sublane multiples (8), seq to lane multiples (128),
    # with a zero tail of at least `pad` lanes per element so roll wrap-around is safe.
    C_in_p = _round_up(C_in, 8)
    C_mid_p = _round_up(C_mid, 8)
    G_p = _round_up(growth, 8)
    L_pad = _round_up(L, 128)
    if L_pad - L < pad:
        L_pad += 128

    # Pack Bt batch elements along the lane axis per grid step.
    itemsize = jnp.dtype(mxu_dtype).itemsize
    bt_lane = max(1, 2048 // L_pad)                                   # ~2K lane target
    bt_vmem = max(1, (4 * 2**20) // (C_in_p * L_pad * itemsize))      # small input block
    Bt = max(1, min(B, bt_lane, bt_vmem))
    if B >= 2:
        Bt = min(Bt, max(1, B // 2))   # keep >=2 grid steps so both v7x TCs get work
    B_pad = _round_up(B, Bt)
    n_bt = B_pad // Bt
    Lt = Bt * L_pad

    x_pad = jnp.zeros((B_pad, C_in_p, L_pad), mxu_dtype).at[:B, :C_in, :L].set(
        x.astype(mxu_dtype))
    x_packed = (x_pad.reshape(n_bt, Bt, C_in_p, L_pad)
                .transpose(0, 2, 1, 3)
                .reshape(n_bt, C_in_p, Lt))

    w1_p = jnp.zeros((C_mid_p, C_in_p), mxu_dtype).at[:C_mid, :C_in].set(
        w1[:, :, 0].astype(mxu_dtype))
    # Stacked tap weights: rows [k*G_p:(k+1)*G_p) hold tap k's (growth, C_mid) matrix.
    w2s_p = (jnp.zeros((K, G_p, C_mid_p), mxu_dtype)
             .at[:, :growth, :C_mid].set(jnp.transpose(w2, (2, 0, 1)).astype(mxu_dtype))
             .reshape(K * G_p, C_mid_p))
    s1_p = jnp.zeros((C_in_p, 1), f32).at[:C_in, 0].set(s1)
    b1_p = jnp.zeros((C_in_p, 1), f32).at[:C_in, 0].set(b1)
    s2_p = jnp.zeros((C_mid_p, 1), f32).at[:C_mid, 0].set(s2)
    b2_p = jnp.zeros((C_mid_p, 1), f32).at[:C_mid, 0].set(b2)

    # Lane-validity mask (host-side constant): 1.0 on real seq lanes, 0.0 on tails.
    lane_valid = (np.arange(Lt) % L_pad) < L
    mask = jnp.asarray(lane_valid.astype(np.float32).reshape(1, Lt))
    apply_mask = bool(L_pad != L)

    # Explicit VMEM budget (2x headroom over rough block/intermediate estimate).
    block_bytes = (
        2 * C_in_p * Lt * itemsize                                   # input, dbl-buffered
        + 2 * G_p * Lt * 4                                           # output, dbl-buffered
        + (C_mid_p * C_in_p + K * G_p * C_mid_p) * itemsize          # resident weights
        + (C_in_p + 2 * C_mid_p + (K + 1) * G_p) * Lt * 4            # h1,y1,h2,y2,acc
        + Lt * 4)
    vmem_limit = int(min(100 * 2**20, max(32 * 2**20, 2 * block_bytes)))

    kernel = functools.partial(
        _dense_bottleneck_kernel,
        kernel_size=K, pad=pad, g_p=G_p, apply_mask=apply_mask)

    const2 = lambda b: (0, 0)      # weights / BN params / mask stay VMEM-resident

    new_feat_packed = pl.pallas_call(
        kernel,
        out_shape=jax.ShapeDtypeStruct((n_bt, G_p, Lt), f32),
        grid_spec=pltpu.PrefetchScalarGridSpec(
            num_scalar_prefetch=0,
            grid=(n_bt,),
            in_specs=[
                pl.BlockSpec((1, C_in_p, Lt), lambda b: (b, 0, 0)),
                pl.BlockSpec((C_mid_p, C_in_p), const2),
                pl.BlockSpec((K * G_p, C_mid_p), const2),
                pl.BlockSpec((C_in_p, 1), const2),
                pl.BlockSpec((C_in_p, 1), const2),
                pl.BlockSpec((C_mid_p, 1), const2),
                pl.BlockSpec((C_mid_p, 1), const2),
                pl.BlockSpec((1, Lt), const2),
            ],
            out_specs=pl.BlockSpec((1, G_p, Lt), lambda b: (b, 0, 0)),
        ),
        compiler_params=pltpu.CompilerParams(
            dimension_semantics=("parallel",),
            vmem_limit_bytes=vmem_limit),
    )(x_packed, w1_p, w2s_p, s1_p, b1_p, s2_p, b2_p, mask)

    new_feat = (new_feat_packed.reshape(n_bt, G_p, Bt, L_pad)
                .transpose(0, 2, 1, 3)
                .reshape(B_pad, G_p, L_pad)[:B, :growth, :L]
                .astype(x.dtype))
    # DenseNet channel concat (groups == 1); input never passes through the kernel.
    return jnp.concatenate([x, new_feat], axis=1)


def reference_forward(x, params, kernel_size):
    """Pure-JAX reference mirroring the PyTorch module (eval mode)."""
    eps = 1e-5
    K = kernel_size
    pad = (K - 1) // 2
    w1, w2 = params["w1"], params["w2"]
    h = (x - params["mean1"][None, :, None]) * jax.lax.rsqrt(
        params["var1"][None, :, None] + eps) * params["gamma1"][None, :, None] \
        + params["beta1"][None, :, None]
    h = jnp.maximum(h, 0.0)
    h = jnp.einsum("oc,bcl->bol", w1[:, :, 0], h)
    h = (h - params["mean2"][None, :, None]) * jax.lax.rsqrt(
        params["var2"][None, :, None] + eps) * params["gamma2"][None, :, None] \
        + params["beta2"][None, :, None]
    h = jnp.maximum(h, 0.0)
    L = x.shape[-1]
    hp = jnp.pad(h, ((0, 0), (0, 0), (pad, pad)))
    out = sum(jnp.einsum("oc,bcl->bol", w2[:, :, k], hp[:, :, k:k + L])
              for k in range(K))
    return jnp.concatenate([x, out], axis=1)


if __name__ == "__main__":
    key = jax.random.PRNGKey(0)
    B, C_in, L = 2, 16, 200           # (batch, channels, seq_len)
    growth, bn_size, K = 8, 4, 5      # growth_rate, bn_size, filter_length (odd)
    C_mid = bn_size * growth

    ks = jax.random.split(key, 11)
    params = {
        "gamma1": jax.random.uniform(ks[0], (C_in,), minval=0.5, maxval=1.5),
        "beta1":  jax.random.normal(ks[1], (C_in,)) * 0.1,
        "mean1":  jax.random.normal(ks[2], (C_in,)) * 0.1,
        "var1":   jax.random.uniform(ks[3], (C_in,), minval=0.5, maxval=1.5),
        "w1":     jax.random.normal(ks[4], (C_mid, C_in, 1)) * 0.2,
        "gamma2": jax.random.uniform(ks[5], (C_mid,), minval=0.5, maxval=1.5),
        "beta2":  jax.random.normal(ks[6], (C_mid,)) * 0.1,
        "mean2":  jax.random.normal(ks[7], (C_mid,)) * 0.1,
        "var2":   jax.random.uniform(ks[8], (C_mid,), minval=0.5, maxval=1.5),
        "w2":     jax.random.normal(ks[9], (growth, C_mid, K)) * 0.2,
    }
    x = jax.random.normal(ks[10], (B, C_in, L), dtype=jnp.float32)

    ref = reference_forward(x, params, K)

    # f32-operand path: tight structural correctness check.
    out_f32 = jax.block_until_ready(
        dense_bottleneck_forward(x, params, kernel_size=K, use_bf16_mxu=False))
    assert out_f32.shape == (B, C_in + growth, L), out_f32.shape
    err_f32 = float(jnp.max(jnp.abs(out_f32 - ref)))
    if err_f32 > 1e-4:
        raise AssertionError(f"f32 kernel/reference mismatch: max abs err = {err_f32}")

    # bf16-MXU path (performance default): bf16-operand error budget (typically ~2e-2).
    out_bf16 = jax.block_until_ready(
        dense_bottleneck_forward(x, params, kernel_size=K, use_bf16_mxu=True))
    assert out_bf16.shape == (B, C_in + growth, L), out_bf16.shape
    err_bf16 = float(jnp.max(jnp.abs(out_bf16 - ref)))
    if err_bf16 > 1e-1:
        raise AssertionError(f"bf16 kernel/reference mismatch: max abs err = {err_bf16}")

    print("KERNEL_OK")
</pallas_src>

<mosaic_0001>
module attributes {stable_mosaic.version = 11 : i64} {
  func.func @_dense_bottleneck_kernel(%arg0: i32, %arg1: memref<1x16x256xf32, #tpu.memory_space<vmem>>, %arg2: memref<32x16xf32, #tpu.memory_space<vmem>>, %arg3: memref<40x32xf32, #tpu.memory_space<vmem>>, %arg4: memref<16x1xf32, #tpu.memory_space<vmem>>, %arg5: memref<16x1xf32, #tpu.memory_space<vmem>>, %arg6: memref<32x1xf32, #tpu.memory_space<vmem>>, %arg7: memref<32x1xf32, #tpu.memory_space<vmem>>, %arg8: memref<1x256xf32, #tpu.memory_space<vmem>>, %arg9: memref<1x8x256xf32, #tpu.memory_space<vmem>>) attributes {dimension_semantics = [#tpu.dimension_semantics<parallel>], iteration_bounds = array<i64: 2>, scalar_prefetch = 0 : i64, scratch_operands = 0 : i64, tpu.core_type = #tpu.core_type<tc>, window_params = [{transform_indices = @transform_0, window_bounds = array<i64: 1, 16, 256>}, {pipeline_mode = #tpu.pipeline_mode<synchronous>, transform_indices = @transform_1, window_bounds = array<i64: 32, 16>}, {pipeline_mode = #tpu.pipeline_mode<synchronous>, transform_indices = @transform_2, window_bounds = array<i64: 40, 32>}, {pipeline_mode = #tpu.pipeline_mode<synchronous>, transform_indices = @transform_3, window_bounds = array<i64: 16, 1>}, {pipeline_mode = #tpu.pipeline_mode<synchronous>, transform_indices = @transform_4, window_bounds = array<i64: 16, 1>}, {pipeline_mode = #tpu.pipeline_mode<synchronous>, transform_indices = @transform_5, window_bounds = array<i64: 32, 1>}, {pipeline_mode = #tpu.pipeline_mode<synchronous>, transform_indices = @transform_6, window_bounds = array<i64: 32, 1>}, {pipeline_mode = #tpu.pipeline_mode<synchronous>, transform_indices = @transform_7, window_bounds = array<i64: 1, 256>}, {transform_indices = @transform_8, window_bounds = array<i64: 1, 8, 256>}]} {
    %c0 = arith.constant 0 : index
    %c0_0 = arith.constant 0 : index
    %c0_1 = arith.constant 0 : index
    %0 = vector.load %arg1[%c0, %c0_0, %c0_1] : memref<1x16x256xf32, #tpu.memory_space<vmem>>, vector<1x16x256xf32>
    %1 = vector.shape_cast %0 : vector<1x16x256xf32> to vector<16x256xf32>
    %c0_2 = arith.constant 0 : index
    %c0_3 = arith.constant 0 : index
    %2 = vector.load %arg4[%c0_2, %c0_3] : memref<16x1xf32, #tpu.memory_space<vmem>>, vector<16x1xf32>
    %3 = vector.broadcast %2 : vector<16x1xf32> to vector<16x256xf32>
    %4 = arith.mulf %1, %3 : vector<16x256xf32>
    %c0_4 = arith.constant 0 : index
    %c0_5 = arith.constant 0 : index
    %5 = vector.load %arg5[%c0_4, %c0_5] : memref<16x1xf32, #tpu.memory_space<vmem>>, vector<16x1xf32>
    %6 = vector.broadcast %5 : vector<16x1xf32> to vector<16x256xf32>
    %7 = arith.addf %4, %6 : vector<16x256xf32>
    %cst = arith.constant 0.000000e+00 : f32
    %8 = vector.broadcast %cst : f32 to vector<16x256xf32>
    %9 = arith.maximumf %7, %8 : vector<16x256xf32>
    %c0_6 = arith.constant 0 : index
    %c0_7 = arith.constant 0 : index
    %10 = vector.load %arg2[%c0_6, %c0_7] : memref<32x16xf32, #tpu.memory_space<vmem>>, vector<32x16xf32>
    %cst_8 = arith.constant dense<0.000000e+00> : vector<32x256xf32>
    %11 = tpu.matmul %10, %9, %cst_8 {dimension_numbers = #tpu.dot_dimension_numbers<[1], [0], [0], [1], [0, 0, 1, 1], [], []>} : vector<32x16xf32>, vector<16x256xf32>, vector<32x256xf32> -> vector<32x256xf32>
    %c0_9 = arith.constant 0 : index
    %c0_10 = arith.constant 0 : index
    %12 = vector.load %arg6[%c0_9, %c0_10] : memref<32x1xf32, #tpu.memory_space<vmem>>, vector<32x1xf32>
    %13 = vector.broadcast %12 : vector<32x1xf32> to vector<32x256xf32>
    %14 = arith.mulf %11, %13 : vector<32x256xf32>
    %c0_11 = arith.constant 0 : index
    %c0_12 = arith.constant 0 : index
    %15 = vector.load %arg7[%c0_11, %c0_12] : memref<32x1xf32, #tpu.memory_space<vmem>>, vector<32x1xf32>
    %16 = vector.broadcast %15 : vector<32x1xf32> to vector<32x256xf32>
    %17 = arith.addf %14, %16 : vector<32x256xf32>
    %cst_13 = arith.constant 0.000000e+00 : f32
    %18 = vector.broadcast %cst_13 : f32 to vector<32x256xf32>
    %19 = arith.maximumf %17, %18 : vector<32x256xf32>
    %c0_14 = arith.constant 0 : index
    %c0_15 = arith.constant 0 : index
    %20 = vector.load %arg8[%c0_14, %c0_15] : memref<1x256xf32, #tpu.memory_space<vmem>>, vector<1x256xf32>
    %21 = vector.broadcast %20 : vector<1x256xf32> to vector<32x256xf32>
    %22 = arith.mulf %19, %21 : vector<32x256xf32>
    %c0_16 = arith.constant 0 : index
    %c0_17 = arith.constant 0 : index
    %23 = vector.load %arg3[%c0_16, %c0_17] : memref<40x32xf32, #tpu.memory_space<vmem>>, vector<40x32xf32>
    %cst_18 = arith.constant dense<0.000000e+00> : vector<40x256xf32>
    %24 = tpu.matmul %23, %22, %cst_18 {dimension_numbers = #tpu.dot_dimension_numbers<[1], [0], [0], [1], [0, 0, 1, 1], [], []>} : vector<40x32xf32>, vector<32x256xf32>, vector<40x256xf32> -> vector<40x256xf32>
    %25 = vector.extract_strided_slice %24 {offsets = [0, 0], sizes = [8, 256], strides = [1, 1]} : vector<40x256xf32> to vector<8x256xf32>
    %c2_i32 = arith.constant 2 : i32
    %26 = tpu.dynamic_rotate %25 by %c2_i32 dim 1 : vector<8x256xf32>, i32 -> vector<8x256xf32>
    %27 = vector.extract_strided_slice %24 {offsets = [8, 0], sizes = [8, 256], strides = [1, 1]} : vector<40x256xf32> to vector<8x256xf32>
    %c1_i32 = arith.constant 1 : i32
    %28 = tpu.dynamic_rotate %27 by %c1_i32 dim 1 : vector<8x256xf32>, i32 -> vector<8x256xf32>
    %29 = arith.addf %26, %28 : vector<8x256xf32>
    %30 = vector.extract_strided_slice %24 {offsets = [16, 0], sizes = [8, 256], strides = [1, 1]} : vector<40x256xf32> to vector<8x256xf32>
    %31 = arith.addf %29, %30 : vector<8x256xf32>
    %32 = vector.extract_strided_slice %24 {offsets = [24, 0], sizes = [8, 256], strides = [1, 1]} : vector<40x256xf32> to vector<8x256xf32>
    %c255_i32 = arith.constant 255 : i32
    %33 = tpu.dynamic_rotate %32 by %c255_i32 dim 1 : vector<8x256xf32>, i32 -> vector<8x256xf32>
    %34 = arith.addf %31, %33 : vector<8x256xf32>
    %35 = vector.extract_strided_slice %24 {offsets = [32, 0], sizes = [8, 256], strides = [1, 1]} : vector<40x256xf32> to vector<8x256xf32>
    %c254_i32 = arith.constant 254 : i32
    %36 = tpu.dynamic_rotate %35 by %c254_i32 dim 1 : vector<8x256xf32>, i32 -> vector<8x256xf32>
    %37 = arith.addf %34, %36 : vector<8x256xf32>
    %c0_19 = arith.constant 0 : index
    %c0_20 = arith.constant 0 : index
    %c0_21 = arith.constant 0 : index
    %38 = vector.load %arg9[%c0_19, %c0_20, %c0_21] : memref<1x8x256xf32, #tpu.memory_space<vmem>>, vector<1x8x256xf32>
    %39 = vector.shape_cast %38 : vector<1x8x256xf32> to vector<8x256xf32>
    %40 = vector.shape_cast %37 : vector<8x256xf32> to vector<1x8x256xf32>
    tpu.vector_store %arg9[%c0_19, %c0_20, %c0_21], %40 {strides = array<i32>} : memref<1x8x256xf32, #tpu.memory_space<vmem>>, vector<1x8x256xf32>,
    return
  }
  func.func @transform_0(%arg0: i32) -> (i32, i32, i32) {
    %c0_i32 = arith.constant 0 : i32
    %c0_i32_0 = arith.constant 0 : i32
    %c0_i32_1 = arith.constant 0 : i32
    return %arg0, %c0_i32, %c0_i32_0 : i32, i32, i32
  }
  func.func @transform_1(%arg0: i32) -> (i32, i32) {
    %c0_i32 = arith.constant 0 : i32
    %c0_i32_0 = arith.constant 0 : i32
    %c0_i32_1 = arith.constant 0 : i32
    return %c0_i32, %c0_i32_0 : i32, i32
  }
  func.func @transform_2(%arg0: i32) -> (i32, i32) {
    %c0_i32 = arith.constant 0 : i32
    %c0_i32_0 = arith.constant 0 : i32
    %c0_i32_1 = arith.constant 0 : i32
    return %c0_i32, %c0_i32_0 : i32, i32
  }
  func.func @transform_3(%arg0: i32) -> (i32, i32) {
    %c0_i32 = arith.constant 0 : i32
    %c0_i32_0 = arith.constant 0 : i32
    %c0_i32_1 = arith.constant 0 : i32
    return %c0_i32, %c0_i32_0 : i32, i32
  }
  func.func @transform_4(%arg0: i32) -> (i32, i32) {
    %c0_i32 = arith.constant 0 : i32
    %c0_i32_0 = arith.constant 0 : i32
    %c0_i32_1 = arith.constant 0 : i32
    return %c0_i32, %c0_i32_0 : i32, i32
  }
  func.func @transform_5(%arg0: i32) -> (i32, i32) {
    %c0_i32 = arith.constant 0 : i32
    %c0_i32_0 = arith.constant 0 : i32
    %c0_i32_1 = arith.constant 0 : i32
    return %c0_i32, %c0_i32_0 : i32, i32
  }
  func.func @transform_6(%arg0: i32) -> (i32, i32) {
    %c0_i32 = arith.constant 0 : i32
    %c0_i32_0 = arith.constant 0 : i32
    %c0_i32_1 = arith.constant 0 : i32
    return %c0_i32, %c0_i32_0 : i32, i32
  }
  func.func @transform_7(%arg0: i32) -> (i32, i32) {
    %c0_i32 = arith.constant 0 : i32
    %c0_i32_0 = arith.constant 0 : i32
    %c0_i32_1 = arith.constant 0 : i32
    return %c0_i32, %c0_i32_0 : i32, i32
  }
  func.func @transform_8(%arg0: i32) -> (i32, i32, i32) {
    %c0_i32 = arith.constant 0 : i32
    %c0_i32_0 = arith.constant 0 : i32
    %c0_i32_1 = arith.constant 0 : i32
    return %arg0, %c0_i32, %c0_i32_0 : i32, i32, i32
  }
}

</mosaic_0001>

<llo_original>
// kernel: dense_bottleneck_forward.1
$region0: #{dense_bottleneck_forward.1}
  #allocation0 [shape = 'u32[]', space=smem, size = 0x4, offset = 0x4, fixed_abs, tag = 'smem constant byte address 0x4 - core index']
  #allocation1 [shape = 'u32[144,128]{1,0:T(1,128)}', space=vmem, size = 0x12000, scoped, tag = 'internal scratch']
  %s0 = inlined_call_operand.vmem [shape: f32[2,16,256], index: 0, kind: input, shape index: {}]
  %s1 = inlined_call_operand.vmem [shape: f32[32,16], index: 1, kind: input, shape index: {}]
  %s2 = inlined_call_operand.vmem [shape: f32[40,32], index: 2, kind: input, shape index: {}]
  %s3 = inlined_call_operand.vmem [shape: f32[16,1], index: 3, kind: input, shape index: {}]
  %s4 = inlined_call_operand.vmem [shape: f32[16,1], index: 4, kind: input, shape index: {}]
  %s5 = inlined_call_operand.vmem [shape: f32[32,1], index: 5, kind: input, shape index: {}]
  %s6 = inlined_call_operand.vmem [shape: f32[32,1], index: 6, kind: input, shape index: {}]
  %s7 = inlined_call_operand.vmem [shape: f32[1,256], index: 7, kind: input, shape index: {}]
  %s8 = inlined_call_operand.vmem [shape: f32[2,8,256], index: 8, kind: output, shape index: {}]
  %s9 = sld [smem:[#allocation0]]
  $region65: #{dense_bottleneck_forward.1} parent=0
    _
  %s11 = ssub.s32 1, %s9
  %s12 = scalar_select 0, %s11, %s9
  loop: start=0, step=1, limit=4
  $region2: #{dense_bottleneck_forward.1} parent=0 // loop_pre_header
    _
  $region3: #{dense_bottleneck_forward.1} parent=0 // loop_header
    %s14 = sphi 0, %s18
    %p15 = scmp.ge.s32.totalorder %s14, 4
    %s24 = sphi 0, %s26
    %s27 = sphi 0, %s24
    %s28 = sphi 0, %s27
    %s44 = sphi 0, %s28
    %s48 = sphi 0, %s48
    %s50 = sphi 0, %s48
    %s51 = sphi 0, %s50
    %s65 = sphi 0, %s51
    %s69 = sphi 0, %s69
    %s71 = sphi 0, %s69
    %s72 = sphi 0, %s71
    %s86 = sphi 0, %s72
    %s90 = sphi 0, %s90
    %s92 = sphi 0, %s90
    %s93 = sphi 0, %s92
    %s107 = sphi 0, %s93
    %s111 = sphi 0, %s111
    %s113 = sphi 0, %s111
    %s114 = sphi 0, %s113
    %s128 = sphi 0, %s114
    %s132 = sphi 0, %s132
    %s134 = sphi 0, %s132
    %s135 = sphi 0, %s134
    %s149 = sphi 0, %s135
    %s153 = sphi 0, %s153
    %s155 = sphi 0, %s153
    %s156 = sphi 0, %s155
    %s170 = sphi 0, %s156
    %s174 = sphi 0, %s174
    %s176 = sphi 0, %s174
    %s177 = sphi 0, %s176
    %s191 = sphi 0, %s177
    %s197 = sphi 0, %s199
    %s200 = sphi 0, %s197
    %s201 = sphi 0, %s200
    %s217 = sphi 0, %s201
  $region4: #{dense_bottleneck_forward.1} parent=0 // loop_header_branch
    %17 = sbr.rel (%p15) target = $region8
  $region5: #{dense_bottleneck_forward.1} parent=0 // loop_body
    %s19 = ssub.s32 %s14, 1
    %s20 = ssub.s32 %s14, 2
    %s21 = sadd.s32 %s14, 1
    %s22 = ssub.s32 %s14, %s21
    %p23 = scmp.eq.s32.totalorder %s22, 0
    %s25 = sadd.s32 %s24, 1
    %s26 = scalar_select %p23, %s24, %s25
    %p29 = pneg %p23
    %p30 = scmp.eq.s32.totalorder %s14, 1
    %p31 = por %p29, %p30
    %p32 = scmp.ne.s32.totalorder %s24, %s27
    %p33 = scmp.eq.s32.totalorder %s14, 0
    %p34 = por %p32, %p33
    %p35 = scmp.ne.s32.totalorder %s24, %s27
    %p36 = scmp.eq.s32.totalorder %s19, 1
    %p37 = por %p35, %p36
    %p38 = scmp.ne.s32.totalorder %s27, %s28
    %p39 = scmp.eq.s32.totalorder %s19, 0
    %p40 = por %p38, %p39
    %p41 = scmp.ne.s32.totalorder %s27, %s28
    %p42 = scmp.eq.s32.totalorder %s20, 1
    %p43 = por %p41, %p42
    %p45 = scmp.ne.s32.totalorder %s28, %s44
    %p46 = scmp.eq.s32.totalorder %s20, 0
    %p47 = por %p45, %p46
    %s49 = sadd.s32 %s48, 1
    %p52 = scmp.eq.s32.totalorder %s14, 1
    %p53 = scmp.ne.s32.totalorder %s48, %s50
    %p54 = scmp.eq.s32.totalorder %s14, 0
    %p55 = por %p53, %p54
    %p56 = scmp.ne.s32.totalorder %s48, %s50
    %p57 = scmp.eq.s32.totalorder %s19, 1
    %p58 = por %p56, %p57
    %p59 = scmp.ne.s32.totalorder %s50, %s51
    %p60 = scmp.eq.s32.totalorder %s19, 0
    %p61 = por %p59, %p60
    %p62 = scmp.ne.s32.totalorder %s50, %s51
    %p63 = scmp.eq.s32.totalorder %s20, 1
    %p64 = por %p62, %p63
    %p66 = scmp.ne.s32.totalorder %s51, %s65
    %p67 = scmp.eq.s32.totalorder %s20, 0
    %p68 = por %p66, %p67
    %s70 = sadd.s32 %s69, 1
    %p73 = scmp.eq.s32.totalorder %s14, 1
    %p74 = scmp.ne.s32.totalorder %s69, %s71
    %p75 = scmp.eq.s32.totalorder %s14, 0
    %p76 = por %p74, %p75
    %p77 = scmp.ne.s32.totalorder %s69, %s71
    %p78 = scmp.eq.s32.totalorder %s19, 1
    %p79 = por %p77, %p78
    %p80 = scmp.ne.s32.totalorder %s71, %s72
    %p81 = scmp.eq.s32.totalorder %s19, 0
    %p82 = por %p80, %p81
    %p83 = scmp.ne.s32.totalorder %s71, %s72
    %p84 = scmp.eq.s32.totalorder %s20, 1
    %p85 = por %p83, %p84
    %p87 = scmp.ne.s32.totalorder %s72, %s86
    %p88 = scmp.eq.s32.totalorder %s20, 0
    %p89 = por %p87, %p88
    %s91 = sadd.s32 %s90, 1
    %p94 = scmp.eq.s32.totalorder %s14, 1
    %p95 = scmp.ne.s32.totalorder %s90, %s92
    %p96 = scmp.eq.s32.totalorder %s14, 0
    %p97 = por %p95, %p96
    %p98 = scmp.ne.s32.totalorder %s90, %s92
    %p99 = scmp.eq.s32.totalorder %s19, 1
    %p100 = por %p98, %p99
    %p101 = scmp.ne.s32.totalorder %s92, %s93
    %p102 = scmp.eq.s32.totalorder %s19, 0
    %p103 = por %p101, %p102
    %p104 = scmp.ne.s32.totalorder %s92, %s93
    %p105 = scmp.eq.s32.totalorder %s20, 1
    %p106 = por %p104, %p105
    %p108 = scmp.ne.s32.totalorder %s93, %s107
    %p109 = scmp.eq.s32.totalorder %s20, 0
    %p110 = por %p108, %p109
    %s112 = sadd.s32 %s111, 1
    %p115 = scmp.eq.s32.totalorder %s14, 1
    %p116 = scmp.ne.s32.totalorder %s111, %s113
    %p117 = scmp.eq.s32.totalorder %s14, 0
    %p118 = por %p116, %p117
    %p119 = scmp.ne.s32.totalorder %s111, %s113
    %p120 = scmp.eq.s32.totalorder %s19, 1
    %p121 = por %p119, %p120
    %p122 = scmp.ne.s32.totalorder %s113, %s114
    %p123 = scmp.eq.s32.totalorder %s19, 0
    %p124 = por %p122, %p123
    %p125 = scmp.ne.s32.totalorder %s113, %s114
    %p126 = scmp.eq.s32.totalorder %s20, 1
    %p127 = por %p125, %p126
    %p129 = scmp.ne.s32.totalorder %s114, %s128
    %p130 = scmp.eq.s32.totalorder %s20, 0
    %p131 = por %p129, %p130
    %s133 = sadd.s32 %s132, 1
    %p136 = scmp.eq.s32.totalorder %s14, 1
    %p137 = scmp.ne.s32.totalorder %s132, %s134
    %p138 = scmp.eq.s32.totalorder %s14, 0
    %p139 = por %p137, %p138
    %p140 = scmp.ne.s32.totalorder %s132, %s134
    %p141 = scmp.eq.s32.totalorder %s19, 1
    %p142 = por %p140, %p141
    %p143 = scmp.ne.s32.totalorder %s134, %s135
    %p144 = scmp.eq.s32.totalorder %s19, 0
    %p145 = por %p143, %p144
    %p146 = scmp.ne.s32.totalorder %s134, %s135
    %p147 = scmp.eq.s32.totalorder %s20, 1
    %p148 = por %p146, %p147
    %p150 = scmp.ne.s32.totalorder %s135, %s149
    %p151 = scmp.eq.s32.totalorder %s20, 0
    %p152 = por %p150, %p151
    %s154 = sadd.s32 %s153, 1
    %p157 = scmp.eq.s32.totalorder %s14, 1
    %p158 = scmp.ne.s32.totalorder %s153, %s155
    %p159 = scmp.eq.s32.totalorder %s14, 0
    %p160 = por %p158, %p159
    %p161 = scmp.ne.s32.totalorder %s153, %s155
    %p162 = scmp.eq.s32.totalorder %s19, 1
    %p163 = por %p161, %p162
    %p164 = scmp.ne.s32.totalorder %s155, %s156
    %p165 = scmp.eq.s32.totalorder %s19, 0
    %p166 = por %p164, %p165
    %p167 = scmp.ne.s32.totalorder %s155, %s156
    %p168 = scmp.eq.s32.totalorder %s20, 1
    %p169 = por %p167, %p168
    %p171 = scmp.ne.s32.totalorder %s156, %s170
    %p172 = scmp.eq.s32.totalorder %s20, 0
    %p173 = por %p171, %p172
    %s175 = sadd.s32 %s174, 1
    %p178 = scmp.eq.s32.totalorder %s14, 1
    %p179 = scmp.ne.s32.totalorder %s174, %s176
    %p180 = scmp.eq.s32.totalorder %s14, 0
    %p181 = por %p179, %p180
    %p182 = scmp.ne.s32.totalorder %s174, %s176
    %p183 = scmp.eq.s32.totalorder %s19, 1
    %p184 = por %p182, %p183
    %p185 = scmp.ne.s32.totalorder %s176, %s177
    %p186 = scmp.eq.s32.totalorder %s19, 0
    %p187 = por %p185, %p186
    %p188 = scmp.ne.s32.totalorder %s176, %s177
    %p189 = scmp.eq.s32.totalorder %s20, 1
    %p190 = por %p188, %p189
    %p192 = scmp.ne.s32.totalorder %s177, %s191
    %p193 = scmp.eq.s32.totalorder %s20, 0
    %p194 = por %p192, %p193
    %s195 = ssub.s32 %s14, %s21
    %p196 = scmp.eq.s32.totalorder %s195, 0
    %s198 = sadd.s32 %s197, 1
    %s199 = scalar_select %p196, %s197, %s198
    %p202 = pneg %p196
    %p203 = scmp.eq.s32.totalorder %s14, 1
    %p204 = por %p202, %p203
    %p205 = scmp.ne.s32.totalorder %s197, %s200
    %p206 = scmp.eq.s32.totalorder %s14, 0
    %p207 = por %p205, %p206
    %p208 = scmp.ne.s32.totalorder %s197, %s200
    %p209 = scmp.eq.s32.totalorder %s19, 1
    %p210 = por %p208, %p209
    %p211 = scmp.ne.s32.totalorder %s200, %s201
    %p212 = scmp.eq.s32.totalorder %s19, 0
    %p213 = por %p211, %p212
    %p214 = scmp.ne.s32.totalorder %s200, %s201
    %p215 = scmp.eq.s32.totalorder %s20, 1
    %p216 = por %p214, %p215
    %p218 = scmp.ne.s32.totalorder %s201, %s217
    %p219 = scmp.eq.s32.totalorder %s20, 0
    %p220 = por %p218, %p219
    %p221 = scmp.le.s32.totalorder 1, %s14
    %p222 = scmp.lt.s32.totalorder %s14, 3
    %p223 = pnand %p221, %p222
    %p224 = pneg %p223
    // Predicated region
    $region9: #{dense_bottleneck_forward.1} parent=5 // pred_check
      _
    $region10: #{dense_bottleneck_forward.1} parent=5 // pred_check_branch
      %226 = sbr.rel (%p223) target = $region12
    $region11: #{dense_bottleneck_forward.1} parent=5 // pred_region
      %s227 = ssub.s32 %s14, 1
      // Predicated region
      $region13: #{dense_bottleneck_forward.1} parent=11 // pred_check
        %p228 = pneg %p61
      $region14: #{dense_bottleneck_forward.1} parent=11 // pred_check_branch
        %230 = sbr.rel (%p228) target = $region16
      $region15: #{dense_bottleneck_forward.1} parent=11 // pred_region
        _
      $region16: #{dense_bottleneck_forward.1} parent=11 // pred_fallthru
        _
      // Predicated region
      $region17: #{dense_bottleneck_forward.1} parent=11 // pred_check
        %p231 = pneg %p82
      $region18: #{dense_bottleneck_forward.1} parent=11 // pred_check_branch
        %233 = sbr.rel (%p231) target = $region20
      $region19: #{dense_bottleneck_forward.1} parent=11 // pred_region
        _
      $region20: #{dense_bottleneck_forward.1} parent=11 // pred_fallthru
        _
      // Predicated region
      $region21: #{dense_bottleneck_forward.1} parent=11 // pred_check
        %p234 = pneg %p103
      $region22: #{dense_bottleneck_forward.1} parent=11 // pred_check_branch
        %236 = sbr.rel (%p234) target = $region24
      $region23: #{dense_bottleneck_forward.1} parent=11 // pred_region
        _
      $region24: #{dense_bottleneck_forward.1} parent=11 // pred_fallthru
        _
      // Predicated region
      $region25: #{dense_bottleneck_forward.1} parent=11 // pred_check
        %p237 = pneg %p124
      $region26: #{dense_bottleneck_forward.1} parent=11 // pred_check_branch
        %239 = sbr.rel (%p237) target = $region28
      $region27: #{dense_bottleneck_forward.1} parent=11 // pred_region
        _
      $region28: #{dense_bottleneck_forward.1} parent=11 // pred_fallthru
        _
      // Predicated region
      $region29: #{dense_bottleneck_forward.1} parent=11 // pred_check
        %p240 = pneg %p145
      $region30: #{dense_bottleneck_forward.1} parent=11 // pred_check_branch
        %242 = sbr.rel (%p240) target = $region32
      $region31: #{dense_bottleneck_forward.1} parent=11 // pred_region
        _
      $region32: #{dense_bottleneck_forward.1} parent=11 // pred_fallthru
        _
      // Predicated region
      $region33: #{dense_bottleneck_forward.1} parent=11 // pred_check
        %p243 = pneg %p166
      $region34: #{dense_bottleneck_forward.1} parent=11 // pred_check_branch
        %245 = sbr.rel (%p243) target = $region36
      $region35: #{dense_bottleneck_forward.1} parent=11 // pred_region
        _
      $region36: #{dense_bottleneck_forward.1} parent=11 // pred_fallthru
        _
      // Predicated region
      $region37: #{dense_bottleneck_forward.1} parent=11 // pred_check
        %p246 = pneg %p187
      $region38: #{dense_bottleneck_forward.1} parent=11 // pred_check_branch
        %248 = sbr.rel (%p246) target = $region40
      $region39: #{dense_bottleneck_forward.1} parent=11 // pred_region
        _
      $region40: #{dense_bottleneck_forward.1} parent=11 // pred_fallthru
        _
    $region12: #{dense_bottleneck_forward.1} parent=5 // pred_fallthru
      _
    %p249 = scmp.lt.s32.totalorder %s14, 2
    // Predicated region
    $region41: #{dense_bottleneck_forward.1} parent=5 // pred_check
      %p250 = pneg %p249
    $region42: #{dense_bottleneck_forward.1} parent=5 // pred_check_branch
      %252 = sbr.rel (%p250) target = $region44
    $region43: #{dense_bottleneck_forward.1} parent=5 // pred_region
      // Predicated region
      $region45: #{dense_bottleneck_forward.1} parent=43 // pred_check
        %p253 = pneg %p34
      $region46: #{dense_bottleneck_forward.1} parent=43 // pred_check_branch
        %255 = sbr.rel (%p253) target = $region48
      $region47: #{dense_bottleneck_forward.1} parent=43 // pred_region
        %p256 = scmp.lt.s32.totalorder %s14, 1
        %s257 = scalar_select %p256, %s14, 1
        %s258 = smul.addr %s257, 4
        %s259 = smul.addr %s258, 8
        %s260 = scalar_lea.vmem %s0, %s259
      $region48: #{dense_bottleneck_forward.1} parent=43 // pred_fallthru
        _
    $region44: #{dense_bottleneck_forward.1} parent=5 // pred_fallthru
      _
    %p261 = scmp.le.s32.totalorder 1, %s14
    %p262 = scmp.lt.s32.totalorder %s14, 3
    %p263 = pnand %p261, %p262
    %p264 = pneg %p263
    // Predicated region
    $region49: #{dense_bottleneck_forward.1} parent=5 // pred_check
      _
    $region50: #{dense_bottleneck_forward.1} parent=5 // pred_check_branch
      %266 = sbr.rel (%p263) target = $region52
    $region51: #{dense_bottleneck_forward.1} parent=5 // pred_region
      %s267 = ssub.s32 %s14, 1
      %p268 = scmp.lt.s32.totalorder %s19, 1
      %s269 = scalar_select %p268, %s19, 1
      %s270 = smul.addr %s269, 4
      %s271 = smul.addr %s270, 8
      %s272 = scalar_lea.vmem %s0, %s271
      %p273 = pneg %p40
      %p274 = pneg %p37
      %p275 = pneg %p61
      %p276 = pneg %p58
      %p277 = pneg %p82
      %p278 = pneg %p79
      %p279 = pneg %p103
      %p280 = pneg %p100
      %p281 = pneg %p124
      %p282 = pneg %p121
      %p283 = pneg %p145
      %p284 = pneg %p142
      %p285 = pneg %p166
      %p286 = pneg %p163
      %p287 = pneg %p187
      %p288 = pneg %p184
      %p289 = pneg %p213
      %p290 = pneg %p210
      %p291 = scmp.lt.s32.totalorder %s19, 1
      %s292 = scalar_select %p291, %s19, 1
      %s293 = smul.addr %s292, 2
      %s294 = smul.addr %s293, 8
      %s295 = scalar_lea.vmem %s8, %s294
      %p296 = scmp.lt.s32.totalorder %s19, 1
      %s297 = scalar_select %p296, %s19, 1
      %s298 = smul.addr %s297, 4
      %s299 = smul.addr %s298, 8
      %s300 = scalar_lea.vmem %s0, %s299
      %p301 = scmp.lt.s32.totalorder %s19, 1
      %s302 = scalar_select %p301, %s19, 1
      %s303 = smul.addr %s302, 2
      %s304 = smul.addr %s303, 8
      %s305 = scalar_lea.vmem %s8, %s304
      %v306 = vld [vmem:[%s300] sm:$0xff]
      %v307 = vld [vmem:[%s300 + $0x8] sm:$0xff]
      %v308 = vld [vmem:[%s300 + $0x10] sm:$0xff]
      %v309 = vld [vmem:[%s300 + $0x18] sm:$0xff]
      %v310 = vld [vmem:[%s3] sm:$0xff]
      %v311 = vld [vmem:[%s3 + $0x8] sm:$0xff]
      %313 = vset.pattern.permute.xlu0 0
      %314 = vperm.xlu0 %313, %v310
      %v315 = vpop.permute.xlu0 %314
      %318 = vset.pattern.permute.xlu0 0
      %319 = vperm.xlu0 %318, %v311
      %v320 = vpop.permute.xlu0 %319
      %v322 = vmul.f32 %v306, %v315
      %v323 = vmul.f32 %v307, %v315
      %v324 = vmul.f32 %v308, %v320
      %v325 = vmul.f32 %v309, %v320
      %v326 = vld [vmem:[%s4] sm:$0xff]
      %v327 = vld [vmem:[%s4 + $0x8] sm:$0xff]
      %329 = vset.pattern.permute.xlu0 0
      %330 = vperm.xlu0 %329, %v326
      %v331 = vpop.permute.xlu0 %330
      %334 = vset.pattern.permute.xlu0 0
      %335 = vperm.xlu0 %334, %v327
      %v336 = vpop.permute.xlu0 %335
      %v338 = vadd.f32 %v322, %v331
      %v339 = vadd.f32 %v323, %v331
      %v340 = vadd.f32 %v324, %v336
      %v341 = vadd.f32 %v325, %v336
      %v342 = vmax.f32 %v338, 0.0
      %v343 = vmax.f32 %v339, 0.0
      %v344 = vmax.f32 %v340, 0.0
      %v345 = vmax.f32 %v341, 0.0
      %v346 = vld [vmem:[%s1] sm:$0xff]
      %v347 = vld [vmem:[%s1 + $0x8] sm:$0xff]
      %v348 = vld [vmem:[%s1 + $0x10] sm:$0xff]
      %v349 = vld [vmem:[%s1 + $0x18] sm:$0xff]
      %vm350 = vcmask 130048
      %v352 = vsel %vm350, %v346, 0
      %v355 = vsel %vm350, %v347, 0
      %v358 = vsel %vm350, %v348, 0
      %v361 = vsel %vm350, %v349, 0
      %363 = vmatprep.subr.mxu0 0.0
      %364 = vmatpush1.msra.mxu0 0.0
      %365 = vmatprep.subr.mxu0 0.0
      %366 = vmatpush1.msra.mxu0 0.0
      %367 = vmatprep.subr.mxu0 0.0
      %368 = vmatpush1.msra.mxu0 0.0
      %369 = vmatprep.subr.mxu0 0.0
      %370 = vmatpush1.msra.mxu0 0.0
      %371 = vmatprep.subr.mxu0 0.0
      %372 = vmatpush1.msra.mxu0 0.0
      %373 = vmatprep.subr.mxu0 0.0
      %374 = vmatpush1.msra.mxu0 0.0
      %375 = vmatprep.subr.mxu0 0.0
      %376 = vmatpush1.msra.mxu0 0.0
      %377 = vmatprep.subr.mxu0 0.0
      %378 = vmatpush1.msra.mxu0 0.0
      %379 = vmatprep.subr.mxu0 0.0
      %380 = vmatpush1.msra.mxu0 0.0
      %381 = vmatprep.subr.mxu0 0.0
      %382 = vmatpush1.msra.mxu0 0.0
      %383 = vmatprep.subr.mxu0 0.0
      %384 = vmatpush1.msra.mxu0 0.0
      %385 = vmatprep.subr.mxu0 0.0
      %386 = vmatpush1.msra.mxu0 0.0
      %387 = vmatprep.subr.mxu0 0.0
      %388 = vmatpush1.msra.mxu0 0.0
      %389 = vmatprep.subr.mxu0 0.0
      %390 = vmatpush1.msra.mxu0 0.0
      %391 = vmatprep.subr.mxu0 %v345
      %392 = vmatpush1.msra.mxu0 %v344
      %393 = vmatprep.subr.mxu0 %v343
      %394 = vmatpush1.msra.mxu0 %v342
      %395 = vmatprep.subr.mxu0 0.0
      %396 = vmatpush2.msra.mxu0 0.0
      %397 = vmatprep.subr.mxu0 0.0
      %398 = vmatpush2.msra.mxu0 0.0
      %399 = vmatprep.subr.mxu0 0.0
      %400 = vmatpush2.msra.mxu0 0.0
      %401 = vmatprep.subr.mxu0 0.0
      %402 = vmatpush2.msra.mxu0 0.0
      %403 = vmatprep.subr.mxu0 0.0
      %404 = vmatpush2.msra.mxu0 0.0
      %405 = vmatprep.subr.mxu0 0.0
      %406 = vmatpush2.msra.mxu0 0.0
      %407 = vmatprep.subr.mxu0 0.0
      %408 = vmatpush2.msra.mxu0 0.0
      %409 = vmatprep.subr.mxu0 0.0
      %410 = vmatpush2.msra.mxu0 0.0
      %411 = vmatprep.subr.mxu0 0.0
      %412 = vmatpush2.msra.mxu0 0.0
      %413 = vmatprep.subr.mxu0 0.0
      %414 = vmatpush2.msra.mxu0 0.0
      %415 = vmatprep.subr.mxu0 0.0
      %416 = vmatpush2.msra.mxu0 0.0
      %417 = vmatprep.subr.mxu0 0.0
      %418 = vmatpush2.msra.mxu0 0.0
      %419 = vmatprep.subr.mxu0 0.0
      %420 = vmatpush2.msra.mxu0 0.0
      %421 = vmatprep.subr.mxu0 0.0
      %422 = vmatpush2.msra.mxu0 0.0
      %423 = vmatprep.subr.mxu0 0.0
      %424 = vmatpush2.msra.mxu0 0.0
      %425 = vmatprep.subr.mxu0 0.0
      %426 = vmatpush2.msra.mxu0 0.0
      %427 = vmatprep.mubr.f32.mxu0 0.0
      %428 = vmatmul.mubr.f32.gmra.mxu0 %v352
      %v429 = vpop.f32.mrf.mxu0
      %v430 = vadd.f32 0.0, %v429
      %v431 = vpop.f32.mrf.mxu0
      %v432 = vadd.f32 0.0, %v431
      %433 = vmatprep.mubr.f32.mxu0 0.0
      %434 = vmatmul.mubr.f32.gmra.mxu0 %v355
      %v435 = vpop.f32.mrf.mxu0
      %v436 = vadd.f32 0.0, %v435
      %v437 = vpop.f32.mrf.mxu0
      %v438 = vadd.f32 0.0, %v437
      %439 = vmatprep.mubr.f32.mxu0 0.0
      %440 = vmatmul.mubr.f32.gmra.mxu0 %v358
      %v441 = vpop.f32.mrf.mxu0
      %v442 = vadd.f32 0.0, %v441
      %v443 = vpop.f32.mrf.mxu0
      %v444 = vadd.f32 0.0, %v443
      %445 = vmatprep.mubr.f32.mxu0 0.0
      %446 = vmatmul.mubr.f32.gmra.mxu0 %v361
      %v447 = vpop.f32.mrf.mxu0
      %v448 = vadd.f32 0.0, %v447
      %v449 = vpop.f32.mrf.mxu0
      %v450 = vadd.f32 0.0, %v449
      %451 = vdwg.mxu0
      %v452 = vld [vmem:[%s5] sm:$0xff]
      %v453 = vld [vmem:[%s5 + $0x8] sm:$0xff]
      %v454 = vld [vmem:[%s5 + $0x10] sm:$0xff]
      %v455 = vld [vmem:[%s5 + $0x18] sm:$0xff]
      %457 = vset.pattern.permute.xlu0 0
      %458 = vperm.xlu0 %457, %v452
      %v459 = vpop.permute.xlu0 %458
      %462 = vset.pattern.permute.xlu0 0
      %463 = vperm.xlu0 %462, %v453
      %v464 = vpop.permute.xlu0 %463
      %467 = vset.pattern.permute.xlu0 0
      %468 = vperm.xlu0 %467, %v454
      %v469 = vpop.permute.xlu0 %468
      %472 = vset.pattern.permute.xlu0 0
      %473 = vperm.xlu0 %472, %v455
      %v474 = vpop.permute.xlu0 %473
      %v476 = vmul.f32 %v430, %v459
      %v477 = vmul.f32 %v432, %v459
      %v478 = vmul.f32 %v436, %v464
      %v479 = vmul.f32 %v438, %v464
      %v480 = vmul.f32 %v442, %v469
      %v481 = vmul.f32 %v444, %v469
      %v482 = vmul.f32 %v448, %v474
      %v483 = vmul.f32 %v450, %v474
      %v484 = vld [vmem:[%s6] sm:$0xff]
      %v485 = vld [vmem:[%s6 + $0x8] sm:$0xff]
      %v486 = vld [vmem:[%s6 + $0x10] sm:$0xff]
      %v487 = vld [vmem:[%s6 + $0x18] sm:$0xff]
      %489 = vset.pattern.permute.xlu0 0
      %490 = vperm.xlu0 %489, %v484
      %v491 = vpop.permute.xlu0 %490
      %494 = vset.pattern.permute.xlu0 0
      %495 = vperm.xlu0 %494, %v485
      %v496 = vpop.permute.xlu0 %495
      %499 = vset.pattern.permute.xlu0 0
      %500 = vperm.xlu0 %499, %v486
      %v501 = vpop.permute.xlu0 %500
      %504 = vset.pattern.permute.xlu0 0
      %505 = vperm.xlu0 %504, %v487
      %v506 = vpop.permute.xlu0 %505
      %v508 = vadd.f32 %v476, %v491
      %v509 = vadd.f32 %v477, %v491
      %v510 = vadd.f32 %v478, %v496
      %v511 = vadd.f32 %v479, %v496
      %v512 = vadd.f32 %v480, %v501
      %v513 = vadd.f32 %v481, %v501
      %v514 = vadd.f32 %v482, %v506
      %v515 = vadd.f32 %v483, %v506
      %v516 = vmax.f32 %v508, 0.0
      %v517 = vmax.f32 %v509, 0.0
      %v518 = vmax.f32 %v510, 0.0
      %v519 = vmax.f32 %v511, 0.0
      %v520 = vmax.f32 %v512, 0.0
      %v521 = vmax.f32 %v513, 0.0
      %v522 = vmax.f32 %v514, 0.0
      %v523 = vmax.f32 %v515, 0.0
      %v524 = vld [vmem:[%s7] sm:$0x3]
      %v526 = vlaneseq
      %v527 = vshrl.u32 %v526, 7
      %v528 = vsub.s32 0, %v527
      %v529 = vrot.slane %v524, %v528
      %v530 = vlaneseq
      %v531 = vshrl.u32 %v530, 7
      %v532 = vsub.s32 1, %v531
      %v533 = vrot.slane %v524, %v532
      %v536 = vmul.f32 %v516, %v529
      %v537 = vmul.f32 %v517, %v533
      %v538 = vmul.f32 %v518, %v529
      %v539 = vmul.f32 %v519, %v533
      %v540 = vmul.f32 %v520, %v529
      %v541 = vmul.f32 %v521, %v533
      %v542 = vmul.f32 %v522, %v529
      %v543 = vmul.f32 %v523, %v533
      %v544 = vld [vmem:[%s2] sm:$0xff]
      %v545 = vld [vmem:[%s2 + $0x8] sm:$0xff]
      %v546 = vld [vmem:[%s2 + $0x10] sm:$0xff]
      %v547 = vld [vmem:[%s2 + $0x18] sm:$0xff]
      %v548 = vld [vmem:[%s2 + $0x20] sm:$0xff]
      %vm549 = vcmask 261120
      %v551 = vsel %vm549, %v544, 0
      %v554 = vsel %vm549, %v545, 0
      %v557 = vsel %vm549, %v546, 0
      %v560 = vsel %vm549, %v547, 0
      %v563 = vsel %vm549, %v548, 0
      %565 = vmatprep.subr.mxu0 0.0
      %566 = vmatpush1.msra.mxu0 0.0
      %567 = vmatprep.subr.mxu0 0.0
      %568 = vmatpush1.msra.mxu0 0.0
      %569 = vmatprep.subr.mxu0 0.0
      %570 = vmatpush1.msra.mxu0 0.0
      %571 = vmatprep.subr.mxu0 0.0
      %572 = vmatpush1.msra.mxu0 0.0
      %573 = vmatprep.subr.mxu0 0.0
      %574 = vmatpush1.msra.mxu0 0.0
      %575 = vmatprep.subr.mxu0 0.0
      %576 = vmatpush1.msra.mxu0 0.0
      %577 = vmatprep.subr.mxu0 0.0
      %578 = vmatpush1.msra.mxu0 0.0
      %579 = vmatprep.subr.mxu0 0.0
      %580 = vmatpush1.msra.mxu0 0.0
      %581 = vmatprep.subr.mxu0 0.0
      %582 = vmatpush1.msra.mxu0 0.0
      %583 = vmatprep.subr.mxu0 0.0
      %584 = vmatpush1.msra.mxu0 0.0
      %585 = vmatprep.subr.mxu0 0.0
      %586 = vmatpush1.msra.mxu0 0.0
      %587 = vmatprep.subr.mxu0 0.0
      %588 = vmatpush1.msra.mxu0 0.0
      %589 = vmatprep.subr.mxu0 %v543
      %590 = vmatpush1.msra.mxu0 %v542
      %591 = vmatprep.subr.mxu0 %v541
      %592 = vmatpush1.msra.mxu0 %v540
      %593 = vmatprep.subr.mxu0 %v539
      %594 = vmatpush1.msra.mxu0 %v538
      %595 = vmatprep.subr.mxu0 %v537
      %596 = vmatpush1.msra.mxu0 %v536
      %597 = vmatprep.subr.mxu0 0.0
      %598 = vmatpush2.msra.mxu0 0.0
      %599 = vmatprep.subr.mxu0 0.0
      %600 = vmatpush2.msra.mxu0 0.0
      %601 = vmatprep.subr.mxu0 0.0
      %602 = vmatpush2.msra.mxu0 0.0
      %603 = vmatprep.subr.mxu0 0.0
      %604 = vmatpush2.msra.mxu0 0.0
      %605 = vmatprep.subr.mxu0 0.0
      %606 = vmatpush2.msra.mxu0 0.0
      %607 = vmatprep.subr.mxu0 0.0
      %608 = vmatpush2.msra.mxu0 0.0
      %609 = vmatprep.subr.mxu0 0.0
      %610 = vmatpush2.msra.mxu0 0.0
      %611 = vmatprep.subr.mxu0 0.0
      %612 = vmatpush2.msra.mxu0 0.0
      %613 = vmatprep.subr.mxu0 0.0
      %614 = vmatpush2.msra.mxu0 0.0
      %615 = vmatprep.subr.mxu0 0.0
      %616 = vmatpush2.msra.mxu0 0.0
      %617 = vmatprep.subr.mxu0 0.0
      %618 = vmatpush2.msra.mxu0 0.0
      %619 = vmatprep.subr.mxu0 0.0
      %620 = vmatpush2.msra.mxu0 0.0
      %621 = vmatprep.subr.mxu0 0.0
      %622 = vmatpush2.msra.mxu0 0.0
      %623 = vmatprep.subr.mxu0 0.0
      %624 = vmatpush2.msra.mxu0 0.0
      %625 = vmatprep.subr.mxu0 0.0
      %626 = vmatpush2.msra.mxu0 0.0
      %627 = vmatprep.subr.mxu0 0.0
      %628 = vmatpush2.msra.mxu0 0.0
      %629 = vmatprep.mubr.f32.mxu0 0.0
      %630 = vmatmul.mubr.f32.gmra.mxu0 %v551
      %v631 = vpop.f32.mrf.mxu0
      %v632 = vadd.f32 0.0, %v631
      %v633 = vpop.f32.mrf.mxu0
      %v634 = vadd.f32 0.0, %v633
      %635 = vmatprep.mubr.f32.mxu0 0.0
      %636 = vmatmul.mubr.f32.gmra.mxu0 %v554
      %v637 = vpop.f32.mrf.mxu0
      %v638 = vadd.f32 0.0, %v637
      %v639 = vpop.f32.mrf.mxu0
      %v640 = vadd.f32 0.0, %v639
      %641 = vmatprep.mubr.f32.mxu0 0.0
      %642 = vmatmul.mubr.f32.gmra.mxu0 %v557
      %v643 = vpop.f32.mrf.mxu0
      %v644 = vadd.f32 0.0, %v643
      %v645 = vpop.f32.mrf.mxu0
      %v646 = vadd.f32 0.0, %v645
      %647 = vmatprep.mubr.f32.mxu0 0.0
      %648 = vmatmul.mubr.f32.gmra.mxu0 %v560
      %v649 = vpop.f32.mrf.mxu0
      %v650 = vadd.f32 0.0, %v649
      %v651 = vpop.f32.mrf.mxu0
      %v652 = vadd.f32 0.0, %v651
      %653 = vmatprep.mubr.f32.mxu0 0.0
      %654 = vmatmul.mubr.f32.gmra.mxu0 %v563
      %v655 = vpop.f32.mrf.mxu0
      %v656 = vadd.f32 0.0, %v655
      %v657 = vpop.f32.mrf.mxu0
      %v658 = vadd.f32 0.0, %v657
      %659 = vdwg.mxu0
      %660 = vrot.lane.b32.xlu0 %v632, 2
      %v661 = vpop.permute.xlu0 %660
      %662 = vrot.lane.b32.xlu0 %v634, 2
      %v663 = vpop.permute.xlu0 %662
      %v664 = vlaneseq
      %v665 = vand.u32 %v664, 127
      %vm666 = vcmp.lt.s32.totalorder %v665, 2
      %v667 = vsel %vm666, %v661, %v663
      %v668 = vsel %vm666, %v663, %v661
      %669 = vrot.lane.b32.xlu0 %v638, 1
      %v670 = vpop.permute.xlu0 %669
      %671 = vrot.lane.b32.xlu0 %v640, 1
      %v672 = vpop.permute.xlu0 %671
      %vm673 = vcmp.lt.s32.totalorder %v665, 1
      %v674 = vsel %vm673, %v670, %v672
      %v675 = vsel %vm673, %v672, %v670
      %v676 = vadd.f32 %v668, %v675
      %v677 = vadd.f32 %v667, %v674
      %v678 = vadd.f32 %v676, %v644
      %v679 = vadd.f32 %v677, %v646
      %680 = vrot.lane.b32.xlu0 %v650, 127
      %v681 = vpop.permute.xlu0 %680
      %682 = vrot.lane.b32.xlu0 %v652, 127
      %v683 = vpop.permute.xlu0 %682
      %vm684 = vcmp.lt.s32.totalorder %v665, 127
      %v685 = vsel %vm684, %v681, %v683
      %v686 = vsel %vm684, %v683, %v681
      %v687 = vadd.f32 %v678, %v685
      %v688 = vadd.f32 %v679, %v686
      %689 = vrot.lane.b32.xlu0 %v656, 126
      %v690 = vpop.permute.xlu0 %689
      %691 = vrot.lane.b32.xlu0 %v658, 126
      %v692 = vpop.permute.xlu0 %691
      %vm693 = vcmp.lt.s32.totalorder %v665, 126
      %v694 = vsel %vm693, %v690, %v692
      %v695 = vsel %vm693, %v692, %v690
      %v696 = vadd.f32 %v687, %v694
      %v697 = vadd.f32 %v688, %v695
      %698 = vst [vmem:[%s305] sm:$0xff] %v696
      %699 = vst [vmem:[%s305 + $0x8] sm:$0xff] %v697
      %p700 = scmp.lt.s32.totalorder %s19, 1
      %s701 = scalar_select %p700, %s19, 1
      %s702 = smul.addr %s701, 2
      %s703 = smul.addr %s702, 8
      %s704 = scalar_lea.vmem %s8, %s703
      // Predicated region
      $region53: #{dense_bottleneck_forward.1} parent=51 // pred_check
        %p705 = pneg %p210
      $region54: #{dense_bottleneck_forward.1} parent=51 // pred_check_branch
        %707 = sbr.rel (%p705) target = $region56
      $region55: #{dense_bottleneck_forward.1} parent=51 // pred_region
        _
      $region56: #{dense_bottleneck_forward.1} parent=51 // pred_fallthru
        _
    $region52: #{dense_bottleneck_forward.1} parent=5 // pred_fallthru
      _
    %p708 = scmp.le.s32.totalorder 2, %s14
    // Predicated region
    $region57: #{dense_bottleneck_forward.1} parent=5 // pred_check
      %p709 = pneg %p708
    $region58: #{dense_bottleneck_forward.1} parent=5 // pred_check_branch
      %711 = sbr.rel (%p709) target = $region60
    $region59: #{dense_bottleneck_forward.1} parent=5 // pred_region
      %s712 = ssub.s32 %s14, 2
      // Predicated region
      $region61: #{dense_bottleneck_forward.1} parent=59 // pred_check
        %p713 = pneg %p216
      $region62: #{dense_bottleneck_forward.1} parent=59 // pred_check_branch
        %715 = sbr.rel (%p713) target = $region64
      $region63: #{dense_bottleneck_forward.1} parent=59 // pred_region
        %p716 = scmp.lt.s32.totalorder %s20, 1
        %s717 = scalar_select %p716, %s20, 1
        %s718 = smul.addr %s717, 2
        %s719 = smul.addr %s718, 8
        %s720 = scalar_lea.vmem %s8, %s719
      $region64: #{dense_bottleneck_forward.1} parent=59 // pred_fallthru
        _
    $region60: #{dense_bottleneck_forward.1} parent=5 // pred_fallthru
      _
  $region6: #{dense_bottleneck_forward.1} parent=0 // loop_footer
    %s18 = sadd.s32 1, %s14
  $region7: #{dense_bottleneck_forward.1} parent=0 // loop_footer_branch
    %13 = sbr.rel target = $region3
  $region8: #{dense_bottleneck_forward.1} parent=0 // loop_exit
    _

</llo_original>
